<compile_context>
chip_gen: v7x
topology: tpu7x:2x2x1
jax: 0.10.0
libtpu: 0.0.40
codegen_flags: <defaults>
</compile_context>

<pallas_src>
import jax
import jax.numpy as jnp
from jax.experimental import pallas as pl
from jax.experimental.pallas import tpu as pltpu


# ---------------------------------------------------------------------------
# Kernels
# ---------------------------------------------------------------------------

def folded_mlp_kernel(x_ref, w_ref, b_ref, out_ref):
    # One batch tile: y = x @ W_fold + b_fold.  (N=1 output is lane-sparse but
    # the kernel is x-DMA bound, so the masked store is hidden under DMA.)
    out_ref[...] = (
        jnp.dot(x_ref[...], w_ref[...], preferred_element_type=jnp.float32)
        + b_ref[...]
    ).astype(out_ref.dtype)


def layered_mlp_kernel(x_ref, w1_ref, b1_ref, w2_ref, b2_ref, wt_ref, bt_ref,
                       out_ref):
    # One batch tile of x; weights resident in VMEM (dropout = identity).
    # Layers 3-5 are pre-folded into (wt, bt) in the wrapper (no activations
    # sit between them).
    h = jnp.dot(x_ref[...], w1_ref[...],
                preferred_element_type=jnp.float32) + b1_ref[...]
    h = jnp.dot(h, w2_ref[...],
                preferred_element_type=jnp.float32) + b2_ref[...]
    h = jnp.dot(h, wt_ref[...],
                preferred_element_type=jnp.float32) + bt_ref[...]
    out_ref[...] = h.astype(out_ref.dtype)


# ---------------------------------------------------------------------------
# Helpers
# ---------------------------------------------------------------------------

def _round_up(x, m):
    return (x + m - 1) // m * m


def _resolve_batch_tile(B, batch_tile, cap):
    """Pick a batch tile.

    Small B -> a single full-extent block (legal regardless of 8-row rule, no
    padding, one grid step).  Large B -> tile capped at `cap` rows but chosen
    so the grid has >= 2 steps (keeps both v7x TensorCores busy via the
    "parallel" grid axis).  Explicit batch_tile is rounded to a multiple of 8.
    """
    if batch_tile is None:
        if B <= cap:
            return B
        batch_tile = min(cap, _round_up(pl.cdiv(B, 2), 8))
    if batch_tile >= B:
        return B
    batch_tile = _round_up(batch_tile, 8)
    return B if batch_tile >= B else batch_tile


def _const_spec(arr):
    """Whole-array VMEM block with a constant index_map: fetched once, never
    re-DMA'd.  Single-buffered to avoid wasting VMEM on an invariant operand
    (falls back to the default if this jax version lacks pipeline_mode)."""
    shape = arr.shape
    index_map = lambda i: (0,) * len(shape)
    try:
        return pl.BlockSpec(shape, index_map, pipeline_mode=pl.Buffered(1))
    except TypeError:
        return pl.BlockSpec(shape, index_map)


def fold_params(params):
    """Fold consecutive affine layers into one: returns (W_fold, b_fold).

    Call this ONCE per weight set (e.g. at model-load time) and pass the
    result to mlp_forward_folded; doing it per forward call costs ~8 tiny XLA
    dots that can exceed the kernel time for small batches.
    """
    (w, b), *rest = params
    for wi, bi in rest:
        w = jnp.dot(w, wi, precision=jax.lax.Precision.HIGHEST)
        b = jnp.dot(b, wi, precision=jax.lax.Precision.HIGHEST) + bi
    return w, b


# ---------------------------------------------------------------------------
# Wrappers
# ---------------------------------------------------------------------------

def mlp_forward_folded(x, w_fold, b_fold, *, batch_tile=None):
    """Fast inference path: single matvec kernel over pre-folded weights.

    x: (B, D) float32 or bfloat16.  w_fold: (D, 1).  b_fold: (1, 1).
    """
    B, D = x.shape
    batch_tile = _resolve_batch_tile(B, batch_tile, cap=1024)
    grid = (pl.cdiv(B, batch_tile),)

    # Keep the MXU in x's dtype (w_fold is ~3 KB so this cast is free);
    # accumulation stays in float32 via preferred_element_type.
    if w_fold.dtype != x.dtype:
        w_fold = w_fold.astype(x.dtype)

    cost = pl.CostEstimate(
        flops=2 * B * D,
        transcendentals=0,
        bytes_accessed=x.dtype.itemsize * B * D + 4 * (D + 1 + B),
    )

    return pl.pallas_call(
        folded_mlp_kernel,
        out_shape=jax.ShapeDtypeStruct((B, 1), jnp.float32),
        grid_spec=pltpu.PrefetchScalarGridSpec(
            num_scalar_prefetch=0,
            grid=grid,
            in_specs=[
                pl.BlockSpec((batch_tile, D), lambda i: (i, 0)),
                pl.BlockSpec((D, 1), lambda i: (0, 0)),
                pl.BlockSpec((1, 1), lambda i: (0, 0)),
            ],
            out_specs=pl.BlockSpec((batch_tile, 1), lambda i: (i, 0)),
        ),
        compiler_params=pltpu.CompilerParams(
            dimension_semantics=("parallel",),
        ),
        cost_estimate=cost,
    )(x, w_fold, b_fold)


def mlp_forward(x, params, *, batch_tile=None):
    """Convenience wrapper: folds params then runs the folded kernel.
    Prefer fold_params(...) once + mlp_forward_folded(...) in hot loops."""
    w_fold, b_fold = fold_params(params)
    return mlp_forward_folded(x, w_fold, b_fold, batch_tile=batch_tile)


def mlp_forward_layers(x, params, *, batch_tile=None):
    """Layered kernel (kept for fidelity / when activations are ever added).

    The affine tail 128->64->16->1 (lane-sparse N=64/16/1) is pre-folded into
    one (128,1) layer since no activation sits between those layers.
    """
    B, D = x.shape
    (w1, b1), (w2, b2) = params[0], params[1]
    wt, bt = fold_params(params[2:])
    # TODO(synk): if activations/dropout masking are ever inserted between the
    #             tail layers, drop this tail fold and restore per-layer dots.

    batch_tile = _resolve_batch_tile(B, batch_tile, cap=512)
    grid = (pl.cdiv(B, batch_tile),)

    in_specs = [
        pl.BlockSpec((batch_tile, D), lambda i: (i, 0)),   # x tile
        _const_spec(w1), _const_spec(b1),
        _const_spec(w2), _const_spec(b2),
        _const_spec(wt), _const_spec(bt),
    ]
    out_spec = pl.BlockSpec((batch_tile, 1), lambda i: (i, 0))

    weight_elems = (w1.size + b1.size + w2.size + b2.size + wt.size + bt.size)
    layer_flops = D * 1024 + 1024 * 128 + 128 * 1
    cost = pl.CostEstimate(
        flops=2 * B * layer_flops,
        transcendentals=0,
        bytes_accessed=x.dtype.itemsize * B * D + 4 * weight_elems + 4 * B,
    )

    return pl.pallas_call(
        layered_mlp_kernel,
        out_shape=jax.ShapeDtypeStruct((B, 1), jnp.float32),
        grid_spec=pltpu.PrefetchScalarGridSpec(
            num_scalar_prefetch=0,
            grid=grid,
            in_specs=in_specs,
            out_specs=out_spec,
        ),
        compiler_params=pltpu.CompilerParams(
            dimension_semantics=("parallel",),
        ),
        cost_estimate=cost,
    )(x, w1, b1, w2, b2, wt, bt)


# ---------------------------------------------------------------------------
# Params / reference
# ---------------------------------------------------------------------------

def init_params(key, input_size):
    """PyTorch-Linear-style init (U(-k, k), k = 1/sqrt(fan_in)).
    Weights stored as (in_features, out_features); biases as (1, out_features)."""
    dims = [input_size, 1024, 128, 64, 16, 1]
    params = []
    for fan_in, fan_out in zip(dims[:-1], dims[1:]):
        key, kw, kb = jax.random.split(key, 3)
        bound = 1.0 / (fan_in ** 0.5)
        w = jax.random.uniform(kw, (fan_in, fan_out), jnp.float32,
                               minval=-bound, maxval=bound)
        b = jax.random.uniform(kb, (1, fan_out), jnp.float32,
                               minval=-bound, maxval=bound)
        params.append((w, b))
    return params


def mlp_reference(x, params):
    h = x
    for w, b in params:
        h = jnp.dot(h, w, precision=jax.lax.Precision.HIGHEST) + b
    return h


if __name__ == "__main__":
    key = jax.random.PRNGKey(0)
    key, kx = jax.random.split(key)

    B = 16            # small batch
    D = 768           # CLIP-embedding-sized input (input_size)

    x = jax.random.normal(kx, (B, D), jnp.float32)
    params = init_params(key, D)

    # Hot-path usage: fold ONCE per weight set, then call the folded kernel.
    w_fold, b_fold = fold_params(params)
    out = jax.block_until_ready(mlp_forward_folded(x, w_fold, b_fold))

    # Layered kernel (fidelity path).
    out_layers = jax.block_until_ready(mlp_forward_layers(x, params))

    ref = mlp_reference(x, params)
    assert out.shape == (B, 1)
    assert out_layers.shape == (B, 1)
    assert jnp.allclose(out_layers, ref, atol=1e-3, rtol=1e-3), \
        "layered kernel mismatch vs reference"
    assert jnp.allclose(out, ref, atol=1e-3, rtol=1e-3), \
        "folded kernel mismatch vs reference"

    # Ragged batch: B not a multiple of the tile -> Pallas handles the partial
    # last block (no wrapper-side pad of x).
    B2 = 19
    key, kx2 = jax.random.split(key)
    x2 = jax.random.normal(kx2, (B2, D), jnp.float32)
    out2 = jax.block_until_ready(
        mlp_forward_folded(x2, w_fold, b_fold, batch_tile=8))
    ref2 = mlp_reference(x2, params)
    assert out2.shape == (B2, 1)
    assert jnp.allclose(out2, ref2, atol=1e-3, rtol=1e-3), \
        "ragged-batch folded kernel mismatch vs reference"

    print("KERNEL_OK")
</pallas_src>

<mosaic_0001>
module attributes {stable_mosaic.version = 11 : i64} {
  func.func @folded_mlp_kernel(%arg0: i32, %arg1: memref<16x768xf32, #tpu.memory_space<vmem>>, %arg2: memref<768x1xf32, #tpu.memory_space<vmem>>, %arg3: memref<1x1xf32, #tpu.memory_space<vmem>>, %arg4: memref<16x1xf32, #tpu.memory_space<vmem>>) attributes {dimension_semantics = [#tpu.dimension_semantics<parallel>], iteration_bounds = array<i64: 1>, scalar_prefetch = 0 : i64, scratch_operands = 0 : i64, tpu.core_type = #tpu.core_type<tc>, window_params = [{transform_indices = @transform_0, window_bounds = array<i64: 16, 768>}, {pipeline_mode = #tpu.pipeline_mode<synchronous>, transform_indices = @transform_1, window_bounds = array<i64: 768, 1>}, {pipeline_mode = #tpu.pipeline_mode<synchronous>, transform_indices = @transform_2, window_bounds = array<i64: 1, 1>}, {transform_indices = @transform_3, window_bounds = array<i64: 16, 1>}]} {
    %c0 = arith.constant 0 : index
    %c0_0 = arith.constant 0 : index
    %0 = vector.load %arg1[%c0, %c0_0] : memref<16x768xf32, #tpu.memory_space<vmem>>, vector<16x768xf32>
    %c0_1 = arith.constant 0 : index
    %c0_2 = arith.constant 0 : index
    %1 = vector.load %arg2[%c0_1, %c0_2] : memref<768x1xf32, #tpu.memory_space<vmem>>, vector<768x1xf32>
    %cst = arith.constant dense<0.000000e+00> : vector<16x1xf32>
    %2 = tpu.matmul %0, %1, %cst {dimension_numbers = #tpu.dot_dimension_numbers<[1], [0], [0], [1], [0, 0, 1, 1], [], []>} : vector<16x768xf32>, vector<768x1xf32>, vector<16x1xf32> -> vector<16x1xf32>
    %c0_3 = arith.constant 0 : index
    %c0_4 = arith.constant 0 : index
    %3 = vector.load %arg3[%c0_3, %c0_4] : memref<1x1xf32, #tpu.memory_space<vmem>>, vector<1x1xf32>
    %4 = vector.broadcast %3 : vector<1x1xf32> to vector<16x1xf32>
    %5 = arith.addf %2, %4 : vector<16x1xf32>
    %c0_5 = arith.constant 0 : index
    %c0_6 = arith.constant 0 : index
    %6 = vector.load %arg4[%c0_5, %c0_6] : memref<16x1xf32, #tpu.memory_space<vmem>>, vector<16x1xf32>
    tpu.vector_store %arg4[%c0_5, %c0_6], %5 {strides = array<i32>} : memref<16x1xf32, #tpu.memory_space<vmem>>, vector<16x1xf32>,
    return
  }
  func.func @transform_0(%arg0: i32) -> (i32, i32) {
    %c0_i32 = arith.constant 0 : i32
    %c0_i32_0 = arith.constant 0 : i32
    return %arg0, %c0_i32 : i32, i32
  }
  func.func @transform_1(%arg0: i32) -> (i32, i32) {
    %c0_i32 = arith.constant 0 : i32
    %c0_i32_0 = arith.constant 0 : i32
    %c0_i32_1 = arith.constant 0 : i32
    return %c0_i32, %c0_i32_0 : i32, i32
  }
  func.func @transform_2(%arg0: i32) -> (i32, i32) {
    %c0_i32 = arith.constant 0 : i32
    %c0_i32_0 = arith.constant 0 : i32
    %c0_i32_1 = arith.constant 0 : i32
    return %c0_i32, %c0_i32_0 : i32, i32
  }
  func.func @transform_3(%arg0: i32) -> (i32, i32) {
    %c0_i32 = arith.constant 0 : i32
    %c0_i32_0 = arith.constant 0 : i32
    return %arg0, %c0_i32 : i32, i32
  }
}

</mosaic_0001>

<llo_original>
// kernel: tpu_custom_call.1
$region0: #{tpu_custom_call.1}
  #allocation0 [shape = 'u32[]', space=smem, size = 0x4, offset = 0x4, fixed_abs, tag = 'smem constant byte address 0x4 - core index']
  #allocation1 [shape = 'u32[144,128]{1,0:T(1,128)}', space=vmem, size = 0x12000, scoped, tag = 'internal scratch']
  #allocation2 [shape = 'f32[1,1]{1,0:T(1,128)S(1)}', space=vmem, size = 0x200, scoped, tag = 'scoped memory for tpu_custom_call.1']
  %s0 = inlined_call_operand.vmem [shape: f32[16,768], index: 0, kind: input, shape index: {}]
  %s1 = inlined_call_operand.vmem [shape: f32[768,1], index: 1, kind: input, shape index: {}]
  %s2 = inlined_call_operand.<no memory space> [shape: f32[1,1], index: 2, kind: input, shape index: {}]
  %s3 = inlined_call_operand.vmem [shape: f32[16,1], index: 3, kind: output, shape index: {}]
  %s4 = sld [smem:[#allocation0]]
  $region22: #{tpu_custom_call.1} parent=0
    _
  %s6 = ssub.s32 1, %s4
  %s7 = scalar_select 0, %s6, %s4
  %v8 = vstv %s2
  %9 = vst [vmem:[#allocation2] sm:$0x1] %v8
  // Predicated region
  $region2: #{tpu_custom_call.1} parent=0 // pred_check
    _
  $region3: #{tpu_custom_call.1} parent=0 // pred_check_branch
    %11 = sbr.rel (0) target = $region5
  $region4: #{tpu_custom_call.1} parent=0 // pred_region
    _
  $region5: #{tpu_custom_call.1} parent=0 // pred_fallthru
    _
  // Predicated region
  $region6: #{tpu_custom_call.1} parent=0 // pred_check
    _
  $region7: #{tpu_custom_call.1} parent=0 // pred_check_branch
    %13 = sbr.rel (0) target = $region9
  $region8: #{tpu_custom_call.1} parent=0 // pred_region
    _
  $region9: #{tpu_custom_call.1} parent=0 // pred_fallthru
    _
  // Predicated region
  $region10: #{tpu_custom_call.1} parent=0 // pred_check
    _
  $region11: #{tpu_custom_call.1} parent=0 // pred_check_branch
    %15 = sbr.rel (0) target = $region13
  $region12: #{tpu_custom_call.1} parent=0 // pred_region
    _
  $region13: #{tpu_custom_call.1} parent=0 // pred_fallthru
    _
  %v16 = vld [vmem:[%s0] sm:$0xff]
  %v17 = vld [vmem:[%s0 + $0x8] sm:$0xff]
  %v18 = vld [vmem:[%s0 + $0x10] sm:$0xff]
  %v19 = vld [vmem:[%s0 + $0x18] sm:$0xff]
  %v20 = vld [vmem:[%s0 + $0x20] sm:$0xff]
  %v21 = vld [vmem:[%s0 + $0x28] sm:$0xff]
  %v22 = vld [vmem:[%s0 + $0x30] sm:$0xff]
  %v23 = vld [vmem:[%s0 + $0x38] sm:$0xff]
  %v24 = vld [vmem:[%s0 + $0x40] sm:$0xff]
  %v25 = vld [vmem:[%s0 + $0x48] sm:$0xff]
  %v26 = vld [vmem:[%s0 + $0x50] sm:$0xff]
  %v27 = vld [vmem:[%s0 + $0x58] sm:$0xff]
  %v28 = vld [vmem:[%s1] sm:$0xff]
  %v29 = vld [vmem:[%s1 + $0x8] sm:$0xff]
  %v30 = vld [vmem:[%s1 + $0x10] sm:$0xff]
  %v31 = vld [vmem:[%s1 + $0x18] sm:$0xff]
  %v32 = vld [vmem:[%s1 + $0x20] sm:$0xff]
  %v33 = vld [vmem:[%s1 + $0x28] sm:$0xff]
  %v34 = vld [vmem:[%s1 + $0x30] sm:$0xff]
  %v35 = vld [vmem:[%s1 + $0x38] sm:$0xff]
  %v36 = vld [vmem:[%s1 + $0x40] sm:$0xff]
  %v37 = vld [vmem:[%s1 + $0x48] sm:$0xff]
  %v38 = vld [vmem:[%s1 + $0x50] sm:$0xff]
  %v39 = vld [vmem:[%s1 + $0x58] sm:$0xff]
  %v40 = vld [vmem:[%s1 + $0x60] sm:$0xff]
  %v41 = vld [vmem:[%s1 + $0x68] sm:$0xff]
  %v42 = vld [vmem:[%s1 + $0x70] sm:$0xff]
  %v43 = vld [vmem:[%s1 + $0x78] sm:$0xff]
  %v44 = vld [vmem:[%s1 + $0x80] sm:$0xff]
  %v45 = vld [vmem:[%s1 + $0x88] sm:$0xff]
  %v46 = vld [vmem:[%s1 + $0x90] sm:$0xff]
  %v47 = vld [vmem:[%s1 + $0x98] sm:$0xff]
  %v48 = vld [vmem:[%s1 + $0xa0] sm:$0xff]
  %v49 = vld [vmem:[%s1 + $0xa8] sm:$0xff]
  %v50 = vld [vmem:[%s1 + $0xb0] sm:$0xff]
  %v51 = vld [vmem:[%s1 + $0xb8] sm:$0xff]
  %v52 = vld [vmem:[%s1 + $0xc0] sm:$0xff]
  %v53 = vld [vmem:[%s1 + $0xc8] sm:$0xff]
  %v54 = vld [vmem:[%s1 + $0xd0] sm:$0xff]
  %v55 = vld [vmem:[%s1 + $0xd8] sm:$0xff]
  %v56 = vld [vmem:[%s1 + $0xe0] sm:$0xff]
  %v57 = vld [vmem:[%s1 + $0xe8] sm:$0xff]
  %v58 = vld [vmem:[%s1 + $0xf0] sm:$0xff]
  %v59 = vld [vmem:[%s1 + $0xf8] sm:$0xff]
  %v60 = vld [vmem:[%s1 + $0x100] sm:$0xff]
  %v61 = vld [vmem:[%s1 + $0x108] sm:$0xff]
  %v62 = vld [vmem:[%s1 + $0x110] sm:$0xff]
  %v63 = vld [vmem:[%s1 + $0x118] sm:$0xff]
  %v64 = vld [vmem:[%s1 + $0x120] sm:$0xff]
  %v65 = vld [vmem:[%s1 + $0x128] sm:$0xff]
  %v66 = vld [vmem:[%s1 + $0x130] sm:$0xff]
  %v67 = vld [vmem:[%s1 + $0x138] sm:$0xff]
  %v68 = vld [vmem:[%s1 + $0x140] sm:$0xff]
  %v69 = vld [vmem:[%s1 + $0x148] sm:$0xff]
  %v70 = vld [vmem:[%s1 + $0x150] sm:$0xff]
  %v71 = vld [vmem:[%s1 + $0x158] sm:$0xff]
  %v72 = vld [vmem:[%s1 + $0x160] sm:$0xff]
  %v73 = vld [vmem:[%s1 + $0x168] sm:$0xff]
  %v74 = vld [vmem:[%s1 + $0x170] sm:$0xff]
  %v75 = vld [vmem:[%s1 + $0x178] sm:$0xff]
  %v76 = vld [vmem:[%s1 + $0x180] sm:$0xff]
  %v77 = vld [vmem:[%s1 + $0x188] sm:$0xff]
  %v78 = vld [vmem:[%s1 + $0x190] sm:$0xff]
  %v79 = vld [vmem:[%s1 + $0x198] sm:$0xff]
  %v80 = vld [vmem:[%s1 + $0x1a0] sm:$0xff]
  %v81 = vld [vmem:[%s1 + $0x1a8] sm:$0xff]
  %v82 = vld [vmem:[%s1 + $0x1b0] sm:$0xff]
  %v83 = vld [vmem:[%s1 + $0x1b8] sm:$0xff]
  %v84 = vld [vmem:[%s1 + $0x1c0] sm:$0xff]
  %v85 = vld [vmem:[%s1 + $0x1c8] sm:$0xff]
  %v86 = vld [vmem:[%s1 + $0x1d0] sm:$0xff]
  %v87 = vld [vmem:[%s1 + $0x1d8] sm:$0xff]
  %v88 = vld [vmem:[%s1 + $0x1e0] sm:$0xff]
  %v89 = vld [vmem:[%s1 + $0x1e8] sm:$0xff]
  %v90 = vld [vmem:[%s1 + $0x1f0] sm:$0xff]
  %v91 = vld [vmem:[%s1 + $0x1f8] sm:$0xff]
  %v92 = vld [vmem:[%s1 + $0x200] sm:$0xff]
  %v93 = vld [vmem:[%s1 + $0x208] sm:$0xff]
  %v94 = vld [vmem:[%s1 + $0x210] sm:$0xff]
  %v95 = vld [vmem:[%s1 + $0x218] sm:$0xff]
  %v96 = vld [vmem:[%s1 + $0x220] sm:$0xff]
  %v97 = vld [vmem:[%s1 + $0x228] sm:$0xff]
  %v98 = vld [vmem:[%s1 + $0x230] sm:$0xff]
  %v99 = vld [vmem:[%s1 + $0x238] sm:$0xff]
  %v100 = vld [vmem:[%s1 + $0x240] sm:$0xff]
  %v101 = vld [vmem:[%s1 + $0x248] sm:$0xff]
  %v102 = vld [vmem:[%s1 + $0x250] sm:$0xff]
  %v103 = vld [vmem:[%s1 + $0x258] sm:$0xff]
  %v104 = vld [vmem:[%s1 + $0x260] sm:$0xff]
  %v105 = vld [vmem:[%s1 + $0x268] sm:$0xff]
  %v106 = vld [vmem:[%s1 + $0x270] sm:$0xff]
  %v107 = vld [vmem:[%s1 + $0x278] sm:$0xff]
  %v108 = vld [vmem:[%s1 + $0x280] sm:$0xff]
  %v109 = vld [vmem:[%s1 + $0x288] sm:$0xff]
  %v110 = vld [vmem:[%s1 + $0x290] sm:$0xff]
  %v111 = vld [vmem:[%s1 + $0x298] sm:$0xff]
  %v112 = vld [vmem:[%s1 + $0x2a0] sm:$0xff]
  %v113 = vld [vmem:[%s1 + $0x2a8] sm:$0xff]
  %v114 = vld [vmem:[%s1 + $0x2b0] sm:$0xff]
  %v115 = vld [vmem:[%s1 + $0x2b8] sm:$0xff]
  %v116 = vld [vmem:[%s1 + $0x2c0] sm:$0xff]
  %v117 = vld [vmem:[%s1 + $0x2c8] sm:$0xff]
  %v118 = vld [vmem:[%s1 + $0x2d0] sm:$0xff]
  %v119 = vld [vmem:[%s1 + $0x2d8] sm:$0xff]
  %v120 = vld [vmem:[%s1 + $0x2e0] sm:$0xff]
  %v121 = vld [vmem:[%s1 + $0x2e8] sm:$0xff]
  %v122 = vld [vmem:[%s1 + $0x2f0] sm:$0xff]
  %v123 = vld [vmem:[%s1 + $0x2f8] sm:$0xff]
  %v124 = vld [vmem:[#allocation2] sm:$0x1]
  %v126 = vlaneseq
  %v127 = vshrl.u32 %v126, 7
  %v128 = vsub.s32 0, %v127
  %v129 = vrot.slane %v124, %v128
  %131 = vmatprep.subr.mxu0 0.0
  %132 = vmatpush1.msra.mxu0 %v28
  %133 = vmatprep.subr.mxu0 0.0
  %134 = vmatpush1.msra.mxu0 %v29
  %135 = vmatprep.subr.mxu0 0.0
  %136 = vmatpush1.msra.mxu0 %v30
  %137 = vmatprep.subr.mxu0 0.0
  %138 = vmatpush1.msra.mxu0 %v31
  %139 = vmatprep.subr.mxu0 0.0
  %140 = vmatpush1.msra.mxu0 %v32
  %141 = vmatprep.subr.mxu0 0.0
  %142 = vmatpush1.msra.mxu0 %v33
  %143 = vmatprep.subr.mxu0 0.0
  %144 = vmatpush1.msra.mxu0 %v34
  %145 = vmatprep.subr.mxu0 0.0
  %146 = vmatpush1.msra.mxu0 %v35
  %147 = vmatprep.subr.mxu0 0.0
  %148 = vmatpush1.msra.mxu0 %v36
  %149 = vmatprep.subr.mxu0 0.0
  %150 = vmatpush1.msra.mxu0 %v37
  %151 = vmatprep.subr.mxu0 0.0
  %152 = vmatpush1.msra.mxu0 %v38
  %153 = vmatprep.subr.mxu0 0.0
  %154 = vmatpush1.msra.mxu0 %v39
  %155 = vmatprep.subr.mxu0 0.0
  %156 = vmatpush1.msra.mxu0 %v40
  %157 = vmatprep.subr.mxu0 0.0
  %158 = vmatpush1.msra.mxu0 %v41
  %159 = vmatprep.subr.mxu0 0.0
  %160 = vmatpush1.msra.mxu0 %v42
  %161 = vmatprep.subr.mxu0 0.0
  %162 = vmatpush1.msra.mxu0 %v43
  %163 = vmatprep.subr.mxu0 0.0
  %164 = vmatpush1.msra.mxu0 %v44
  %165 = vmatprep.subr.mxu0 0.0
  %166 = vmatpush1.msra.mxu0 %v45
  %167 = vmatprep.subr.mxu0 0.0
  %168 = vmatpush1.msra.mxu0 %v46
  %169 = vmatprep.subr.mxu0 0.0
  %170 = vmatpush1.msra.mxu0 %v47
  %171 = vmatprep.subr.mxu0 0.0
  %172 = vmatpush1.msra.mxu0 %v48
  %173 = vmatprep.subr.mxu0 0.0
  %174 = vmatpush1.msra.mxu0 %v49
  %175 = vmatprep.subr.mxu0 0.0
  %176 = vmatpush1.msra.mxu0 %v50
  %177 = vmatprep.subr.mxu0 0.0
  %178 = vmatpush1.msra.mxu0 %v51
  %179 = vmatprep.subr.mxu0 0.0
  %180 = vmatpush1.msra.mxu0 %v52
  %181 = vmatprep.subr.mxu0 0.0
  %182 = vmatpush1.msra.mxu0 %v53
  %183 = vmatprep.subr.mxu0 0.0
  %184 = vmatpush1.msra.mxu0 %v54
  %185 = vmatprep.subr.mxu0 0.0
  %186 = vmatpush1.msra.mxu0 %v55
  %187 = vmatprep.subr.mxu0 0.0
  %188 = vmatpush1.msra.mxu0 %v56
  %189 = vmatprep.subr.mxu0 0.0
  %190 = vmatpush1.msra.mxu0 %v57
  %191 = vmatprep.subr.mxu0 0.0
  %192 = vmatpush1.msra.mxu0 %v58
  %193 = vmatprep.subr.mxu0 0.0
  %194 = vmatpush1.msra.mxu0 %v59
  %195 = vmatprep.mubr.f32.mxu0 %v17
  %196 = vmatmul.mubr.f32.gmra.mrb[0].mxu0 %v16
  %v197 = vpop.f32.mrb[0].mxu0
  %v198 = vadd.f32 %v129, %v197
  %v199 = vpop.f32.mrb[0].mxu0
  %200 = vmatprep.mubr.f32.mxu0 %v23
  %201 = vmatmul.mubr.f32.gmra.mrb[0].mxu0 %v22
  %v202 = vpop.f32.mrb[0].mxu0
  %v203 = vadd.f32 %v129, %v202
  %v204 = vpop.f32.mrb[0].mxu0
  %205 = vdwg.mxu0
  %206 = vmatprep.subr.mxu0 0.0
  %207 = vmatpush1.msra.mxu0 %v60
  %208 = vmatprep.subr.mxu0 0.0
  %209 = vmatpush1.msra.mxu0 %v61
  %210 = vmatprep.subr.mxu0 0.0
  %211 = vmatpush1.msra.mxu0 %v62
  %212 = vmatprep.subr.mxu0 0.0
  %213 = vmatpush1.msra.mxu0 %v63
  %214 = vmatprep.subr.mxu0 0.0
  %215 = vmatpush1.msra.mxu0 %v64
  %216 = vmatprep.subr.mxu0 0.0
  %217 = vmatpush1.msra.mxu0 %v65
  %218 = vmatprep.subr.mxu0 0.0
  %219 = vmatpush1.msra.mxu0 %v66
  %220 = vmatprep.subr.mxu0 0.0
  %221 = vmatpush1.msra.mxu0 %v67
  %222 = vmatprep.subr.mxu0 0.0
  %223 = vmatpush1.msra.mxu0 %v68
  %224 = vmatprep.subr.mxu0 0.0
  %225 = vmatpush1.msra.mxu0 %v69
  %226 = vmatprep.subr.mxu0 0.0
  %227 = vmatpush1.msra.mxu0 %v70
  %228 = vmatprep.subr.mxu0 0.0
  %229 = vmatpush1.msra.mxu0 %v71
  %230 = vmatprep.subr.mxu0 0.0
  %231 = vmatpush1.msra.mxu0 %v72
  %232 = vmatprep.subr.mxu0 0.0
  %233 = vmatpush1.msra.mxu0 %v73
  %234 = vmatprep.subr.mxu0 0.0
  %235 = vmatpush1.msra.mxu0 %v74
  %236 = vmatprep.subr.mxu0 0.0
  %237 = vmatpush1.msra.mxu0 %v75
  %238 = vmatprep.subr.mxu0 0.0
  %239 = vmatpush1.msra.mxu0 %v76
  %240 = vmatprep.subr.mxu0 0.0
  %241 = vmatpush1.msra.mxu0 %v77
  %242 = vmatprep.subr.mxu0 0.0
  %243 = vmatpush1.msra.mxu0 %v78
  %244 = vmatprep.subr.mxu0 0.0
  %245 = vmatpush1.msra.mxu0 %v79
  %246 = vmatprep.subr.mxu0 0.0
  %247 = vmatpush1.msra.mxu0 %v80
  %248 = vmatprep.subr.mxu0 0.0
  %249 = vmatpush1.msra.mxu0 %v81
  %250 = vmatprep.subr.mxu0 0.0
  %251 = vmatpush1.msra.mxu0 %v82
  %252 = vmatprep.subr.mxu0 0.0
  %253 = vmatpush1.msra.mxu0 %v83
  %254 = vmatprep.subr.mxu0 0.0
  %255 = vmatpush1.msra.mxu0 %v84
  %256 = vmatprep.subr.mxu0 0.0
  %257 = vmatpush1.msra.mxu0 %v85
  %258 = vmatprep.subr.mxu0 0.0
  %259 = vmatpush1.msra.mxu0 %v86
  %260 = vmatprep.subr.mxu0 0.0
  %261 = vmatpush1.msra.mxu0 %v87
  %262 = vmatprep.subr.mxu0 0.0
  %263 = vmatpush1.msra.mxu0 %v88
  %264 = vmatprep.subr.mxu0 0.0
  %265 = vmatpush1.msra.mxu0 %v89
  %266 = vmatprep.subr.mxu0 0.0
  %267 = vmatpush1.msra.mxu0 %v90
  %268 = vmatprep.subr.mxu0 0.0
  %269 = vmatpush1.msra.mxu0 %v91
  %270 = vmatprep.mubr.f32.mxu0 %v19
  %271 = vmatmul.mubr.f32.gmra.mrb[0].mxu0 %v18
  %v272 = vpop.f32.mrb[0].mxu0
  %v273 = vadd.f32 %v198, %v272
  %v274 = vpop.f32.mrb[0].mxu0
  %275 = vmatprep.mubr.f32.mxu0 %v25
  %276 = vmatmul.mubr.f32.gmra.mrb[0].mxu0 %v24
  %v277 = vpop.f32.mrb[0].mxu0
  %v278 = vadd.f32 %v203, %v277
  %v279 = vpop.f32.mrb[0].mxu0
  %280 = vdwg.mxu0
  %281 = vmatprep.subr.mxu0 0.0
  %282 = vmatpush1.msra.mxu0 %v92
  %283 = vmatprep.subr.mxu0 0.0
  %284 = vmatpush1.msra.mxu0 %v93
  %285 = vmatprep.subr.mxu0 0.0
  %286 = vmatpush1.msra.mxu0 %v94
  %287 = vmatprep.subr.mxu0 0.0
  %288 = vmatpush1.msra.mxu0 %v95
  %289 = vmatprep.subr.mxu0 0.0
  %290 = vmatpush1.msra.mxu0 %v96
  %291 = vmatprep.subr.mxu0 0.0
  %292 = vmatpush1.msra.mxu0 %v97
  %293 = vmatprep.subr.mxu0 0.0
  %294 = vmatpush1.msra.mxu0 %v98
  %295 = vmatprep.subr.mxu0 0.0
  %296 = vmatpush1.msra.mxu0 %v99
  %297 = vmatprep.subr.mxu0 0.0
  %298 = vmatpush1.msra.mxu0 %v100
  %299 = vmatprep.subr.mxu0 0.0
  %300 = vmatpush1.msra.mxu0 %v101
  %301 = vmatprep.subr.mxu0 0.0
  %302 = vmatpush1.msra.mxu0 %v102
  %303 = vmatprep.subr.mxu0 0.0
  %304 = vmatpush1.msra.mxu0 %v103
  %305 = vmatprep.subr.mxu0 0.0
  %306 = vmatpush1.msra.mxu0 %v104
  %307 = vmatprep.subr.mxu0 0.0
  %308 = vmatpush1.msra.mxu0 %v105
  %309 = vmatprep.subr.mxu0 0.0
  %310 = vmatpush1.msra.mxu0 %v106
  %311 = vmatprep.subr.mxu0 0.0
  %312 = vmatpush1.msra.mxu0 %v107
  %313 = vmatprep.subr.mxu0 0.0
  %314 = vmatpush1.msra.mxu0 %v108
  %315 = vmatprep.subr.mxu0 0.0
  %316 = vmatpush1.msra.mxu0 %v109
  %317 = vmatprep.subr.mxu0 0.0
  %318 = vmatpush1.msra.mxu0 %v110
  %319 = vmatprep.subr.mxu0 0.0
  %320 = vmatpush1.msra.mxu0 %v111
  %321 = vmatprep.subr.mxu0 0.0
  %322 = vmatpush1.msra.mxu0 %v112
  %323 = vmatprep.subr.mxu0 0.0
  %324 = vmatpush1.msra.mxu0 %v113
  %325 = vmatprep.subr.mxu0 0.0
  %326 = vmatpush1.msra.mxu0 %v114
  %327 = vmatprep.subr.mxu0 0.0
  %328 = vmatpush1.msra.mxu0 %v115
  %329 = vmatprep.subr.mxu0 0.0
  %330 = vmatpush1.msra.mxu0 %v116
  %331 = vmatprep.subr.mxu0 0.0
  %332 = vmatpush1.msra.mxu0 %v117
  %333 = vmatprep.subr.mxu0 0.0
  %334 = vmatpush1.msra.mxu0 %v118
  %335 = vmatprep.subr.mxu0 0.0
  %336 = vmatpush1.msra.mxu0 %v119
  %337 = vmatprep.subr.mxu0 0.0
  %338 = vmatpush1.msra.mxu0 %v120
  %339 = vmatprep.subr.mxu0 0.0
  %340 = vmatpush1.msra.mxu0 %v121
  %341 = vmatprep.subr.mxu0 0.0
  %342 = vmatpush1.msra.mxu0 %v122
  %343 = vmatprep.subr.mxu0 0.0
  %344 = vmatpush1.msra.mxu0 %v123
  %345 = vmatprep.mubr.f32.mxu0 %v21
  %346 = vmatmul.mubr.f32.gmra.mrb[0].mxu0 %v20
  %v347 = vpop.f32.mrb[0].mxu0
  %v348 = vadd.f32 %v273, %v347
  %v349 = vpop.f32.mrb[0].mxu0
  %350 = vmatprep.mubr.f32.mxu0 %v27
  %351 = vmatmul.mubr.f32.gmra.mrb[0].mxu0 %v26
  %v352 = vpop.f32.mrb[0].mxu0
  %v353 = vadd.f32 %v278, %v352
  %v354 = vpop.f32.mrb[0].mxu0
  %355 = vdwg.mxu0
  %vm356 = vcmask 7168
  %357 = vst.msk [vmem:[%s3] sm:$0xff] %vm356, %v348
  %358 = vst.msk [vmem:[%s3 + $0x8] sm:$0xff] %vm356, %v353
  // Predicated region
  $region14: #{tpu_custom_call.1} parent=0 // pred_check
    _
  $region15: #{tpu_custom_call.1} parent=0 // pred_check_branch
    %360 = sbr.rel (0) target = $region17
  $region16: #{tpu_custom_call.1} parent=0 // pred_region
    _
  $region17: #{tpu_custom_call.1} parent=0 // pred_fallthru
    _
  // Predicated region
  $region18: #{tpu_custom_call.1} parent=0 // pred_check
    _
  $region19: #{tpu_custom_call.1} parent=0 // pred_check_branch
    %362 = sbr.rel (0) target = $region21
  $region20: #{tpu_custom_call.1} parent=0 // pred_region
    _
  $region21: #{tpu_custom_call.1} parent=0 // pred_fallthru
    _

</llo_original>
